<compile_context>
chip_gen: v6e
topology: v6e:2x2x1
jax: 0.10.0
libtpu: 0.0.40
codegen_flags: <defaults>
</compile_context>

<pallas_src>
import functools

import jax
import jax.numpy as jnp
from jax.experimental import pallas as pl
from jax.experimental.pallas import tpu as pltpu

MARGIN = 2.0
PAIRWISE_EPS = 1e-6  # matches F.pairwise_distance default eps


def _contrastive_rows_kernel(x1_ref, x2_ref, label_ref, out_ref, *,
                             total_rows, block_rows, margin, eps, needs_mask):
    x1 = x1_ref[...]                                               # (tb, D)
    x2 = x2_ref[...]                                               # (tb, D)
    lab = label_ref[...]                                           # (tb, 1)

    diff = x1 - x2 + eps                                           # torch adds eps pre-norm
    sq_dist = jnp.sum(diff * diff, axis=1, keepdims=True)          # (tb, 1), XLU reduce
    dist = jnp.sqrt(sq_dist)                                       # EUP sqrt (hinge path only)
    hinge = jnp.maximum(margin - dist, 0.0)
    per_row = (1.0 - lab) * sq_dist + lab * (hinge * hinge)        # (tb, 1)

    if needs_mask:
        # Only the last block can be partial; padded rows hold undefined VMEM data.
        # Pallas drops out-of-bounds rows on writeback anyway, this just guarantees
        # the in-block values are finite.  Statically skipped when B % TB == 0.
        i = pl.program_id(0)
        row_ids = i * block_rows + jax.lax.broadcasted_iota(
            jnp.int32, per_row.shape, 0)
        per_row = jnp.where(row_ids < total_rows, per_row, 0.0)

    out_ref[...] = per_row


def _choose_block_rows(batch, feat, itemsize=4,
                       pipeline_budget_bytes=24 * 1024 * 1024):
    """Largest row tile whose double-buffered pipeline buffers fit the budget."""
    # Per block row: x1 + x2 tiles (2 bufs * 2 arrays * feat * 4B) plus the
    # lane-padded label and per-row-loss tiles ((TB, 1) occupies (TB, 128) lanes
    # in VMEM; 2 arrays * 2 bufs * 128 * 4B).
    per_row = 2 * 2 * feat * itemsize + 4 * 128 * itemsize
    tb = pipeline_budget_bytes // per_row
    if tb >= batch:
        return int(batch)               # single block == full array dims, always legal
    tb = max(8, (tb // 8) * 8)          # keep (8, 128) sublane alignment
    return int(min(tb, 2048))


def _pipeline_vmem_bytes(tb, feat, itemsize=4):
    return 2 * (2 * tb * feat * itemsize + 2 * tb * 128 * itemsize)


def contrastive_loss(output1, output2, label, margin=MARGIN, block_rows=None):
    """output1, output2: (B, D); label: (B, 1) or (B,). Returns scalar f32 loss."""
    output1 = jnp.asarray(output1, jnp.float32)
    output2 = jnp.asarray(output2, jnp.float32)
    label = jnp.asarray(label, jnp.float32)
    if label.ndim == 1:
        label = label[:, None]

    B, D = output1.shape
    assert output2.shape == (B, D)
    assert label.shape == (B, 1)

    tb = _choose_block_rows(B, D) if block_rows is None else int(min(block_rows, B))
    grid = (pl.cdiv(B, tb),)
    needs_mask = (B % tb) != 0

    pipeline_bytes = _pipeline_vmem_bytes(tb, D)
    vmem_limit = int(min(max(2 * pipeline_bytes, 16 * 1024 * 1024),
                         48 * 1024 * 1024))          # well inside v7x's 64 MiB physical

    kernel = functools.partial(
        _contrastive_rows_kernel,
        total_rows=B, block_rows=tb, margin=float(margin),
        eps=PAIRWISE_EPS, needs_mask=needs_mask)

    per_row = pl.pallas_call(
        kernel,
        out_shape=jax.ShapeDtypeStruct((B, 1), jnp.float32),
        grid_spec=pltpu.PrefetchScalarGridSpec(
            num_scalar_prefetch=0,
            grid=grid,
            in_specs=[
                pl.BlockSpec((tb, D), lambda i: (i, 0)),
                pl.BlockSpec((tb, D), lambda i: (i, 0)),
                pl.BlockSpec((tb, 1), lambda i: (i, 0)),
            ],
            out_specs=pl.BlockSpec((tb, 1), lambda i: (i, 0)),
        ),
        compiler_params=pltpu.CompilerParams(
            dimension_semantics=("parallel",),       # independent blocks -> megacore-shardable
            vmem_limit_bytes=vmem_limit,
        ),
        cost_estimate=pl.CostEstimate(
            flops=4 * B * D + 10 * B,
            transcendentals=B,
            bytes_accessed=4 * (2 * B * D + B) + 4 * B,
        ),
    )(output1, output2, label)

    # Final scalar mean over B per-row losses (tiny XLA reduce).
    return jnp.sum(per_row) * (1.0 / B)


def _reference_loss(output1, output2, label, margin=MARGIN):
    diff = output1 - output2 + PAIRWISE_EPS
    dist = jnp.sqrt(jnp.sum(diff * diff, axis=1, keepdims=True))
    return jnp.mean((1.0 - label) * dist ** 2
                    + label * jnp.maximum(margin - dist, 0.0) ** 2)


if __name__ == "__main__":
    key = jax.random.PRNGKey(0)
    k1, k2, k3, k4, k5, k6 = jax.random.split(key, 6)

    # Case 1: small shapes consistent with the module (single block path).
    B, D = 8, 32
    output1 = jax.random.normal(k1, (B, D), dtype=jnp.float32)
    output2 = jax.random.normal(k2, (B, D), dtype=jnp.float32)
    label = jax.random.bernoulli(k3, 0.5, (B, 1)).astype(jnp.float32)

    loss = contrastive_loss(output1, output2, label)
    jax.block_until_ready(loss)
    ref = _reference_loss(output1, output2, label)
    assert jnp.allclose(loss, ref, rtol=1e-5, atol=1e-5), (loss, ref)

    # Case 2: exercise the multi-block parallel grid + masked partial last tile.
    B2, D2 = 20, 32          # grid of 3 blocks of 8 rows, last block half-masked
    o1 = jax.random.normal(k4, (B2, D2), dtype=jnp.float32)
    o2 = jax.random.normal(k5, (B2, D2), dtype=jnp.float32)
    lab2 = jax.random.bernoulli(k6, 0.5, (B2, 1)).astype(jnp.float32)

    loss2 = contrastive_loss(o1, o2, lab2, block_rows=8)
    jax.block_until_ready(loss2)
    ref2 = _reference_loss(o1, o2, lab2)
    assert jnp.allclose(loss2, ref2, rtol=1e-5, atol=1e-5), (loss2, ref2)

    print("KERNEL_OK")
</pallas_src>

<mosaic_0001>
module attributes {stable_mosaic.version = 11 : i64} {
  func.func @_contrastive_rows_kernel(%arg0: i32, %arg1: memref<8x32xf32, #tpu.memory_space<vmem>>, %arg2: memref<8x32xf32, #tpu.memory_space<vmem>>, %arg3: memref<8x1xf32, #tpu.memory_space<vmem>>, %arg4: memref<8x1xf32, #tpu.memory_space<vmem>>) attributes {dimension_semantics = [#tpu.dimension_semantics<parallel>], iteration_bounds = array<i64: 1>, scalar_prefetch = 0 : i64, scratch_operands = 0 : i64, tpu.core_type = #tpu.core_type<tc>, window_params = [{transform_indices = @transform_0, window_bounds = array<i64: 8, 32>}, {transform_indices = @transform_1, window_bounds = array<i64: 8, 32>}, {transform_indices = @transform_2, window_bounds = array<i64: 8, 1>}, {transform_indices = @transform_3, window_bounds = array<i64: 8, 1>}]} {
    %c0 = arith.constant 0 : index
    %c0_0 = arith.constant 0 : index
    %0 = vector.load %arg1[%c0, %c0_0] : memref<8x32xf32, #tpu.memory_space<vmem>>, vector<8x32xf32>
    %c0_1 = arith.constant 0 : index
    %c0_2 = arith.constant 0 : index
    %1 = vector.load %arg2[%c0_1, %c0_2] : memref<8x32xf32, #tpu.memory_space<vmem>>, vector<8x32xf32>
    %c0_3 = arith.constant 0 : index
    %c0_4 = arith.constant 0 : index
    %2 = vector.load %arg3[%c0_3, %c0_4] : memref<8x1xf32, #tpu.memory_space<vmem>>, vector<8x1xf32>
    %3 = arith.subf %0, %1 : vector<8x32xf32>
    %cst = arith.constant 9.99999997E-7 : f32
    %4 = vector.broadcast %cst : f32 to vector<8x32xf32>
    %5 = arith.addf %3, %4 : vector<8x32xf32>
    %6 = arith.mulf %5, %5 : vector<8x32xf32>
    %cst_5 = arith.constant dense<0.000000e+00> : vector<8xf32>
    %7 = vector.multi_reduction <add>, %6, %cst_5 [1] : vector<8x32xf32> to vector<8xf32>
    %8 = vector.shape_cast %7 : vector<8xf32> to vector<8x1xf32>
    %9 = math.sqrt %8 : vector<8x1xf32>
    %cst_6 = arith.constant 2.000000e+00 : f32
    %10 = vector.broadcast %cst_6 : f32 to vector<8x1xf32>
    %11 = arith.subf %10, %9 : vector<8x1xf32>
    %cst_7 = arith.constant 0.000000e+00 : f32
    %12 = vector.broadcast %cst_7 : f32 to vector<8x1xf32>
    %13 = arith.maximumf %11, %12 : vector<8x1xf32>
    %cst_8 = arith.constant 1.000000e+00 : f32
    %14 = vector.broadcast %cst_8 : f32 to vector<8x1xf32>
    %15 = arith.subf %14, %2 : vector<8x1xf32>
    %16 = arith.mulf %15, %8 : vector<8x1xf32>
    %17 = arith.mulf %13, %13 : vector<8x1xf32>
    %18 = arith.mulf %2, %17 : vector<8x1xf32>
    %19 = arith.addf %16, %18 : vector<8x1xf32>
    %c0_9 = arith.constant 0 : index
    %c0_10 = arith.constant 0 : index
    %20 = vector.load %arg4[%c0_9, %c0_10] : memref<8x1xf32, #tpu.memory_space<vmem>>, vector<8x1xf32>
    tpu.vector_store %arg4[%c0_9, %c0_10], %19 {strides = array<i32>} : memref<8x1xf32, #tpu.memory_space<vmem>>, vector<8x1xf32>,
    return
  }
  func.func @transform_0(%arg0: i32) -> (i32, i32) {
    %c0_i32 = arith.constant 0 : i32
    %c0_i32_0 = arith.constant 0 : i32
    return %arg0, %c0_i32 : i32, i32
  }
  func.func @transform_1(%arg0: i32) -> (i32, i32) {
    %c0_i32 = arith.constant 0 : i32
    %c0_i32_0 = arith.constant 0 : i32
    return %arg0, %c0_i32 : i32, i32
  }
  func.func @transform_2(%arg0: i32) -> (i32, i32) {
    %c0_i32 = arith.constant 0 : i32
    %c0_i32_0 = arith.constant 0 : i32
    return %arg0, %c0_i32 : i32, i32
  }
  func.func @transform_3(%arg0: i32) -> (i32, i32) {
    %c0_i32 = arith.constant 0 : i32
    %c0_i32_0 = arith.constant 0 : i32
    return %arg0, %c0_i32 : i32, i32
  }
}

</mosaic_0001>

<llo_original>
// kernel: tpu_custom_call.1
$region0: #{tpu_custom_call.1}
  #allocation0 [shape = 'u32[]', space=smem, size = 0x4, offset = 0x4, fixed_abs, tag = 'smem constant byte address 0x4 - core index']
  #allocation1 [shape = 'u32[144,128]{1,0:T(1,128)}', space=vmem, size = 0x12000, scoped, tag = 'internal scratch']
  %s0 = inlined_call_operand.vmem [shape: f32[8,32], index: 0, kind: input, shape index: {}]
  %s1 = inlined_call_operand.hbm [shape: f32[8,32], index: 1, kind: input, shape index: {}]
  %s2 = inlined_call_operand.vmem [shape: f32[8,1], index: 2, kind: input, shape index: {}]
  %s3 = inlined_call_operand.vmem [shape: f32[8,1], index: 3, kind: output, shape index: {}]
  %s4 = sld [smem:[#allocation0]]
  $region26: #{tpu_custom_call.1} parent=0
    _
  %s6 = ssub.s32 1, %s4
  %s7 = scalar_select 0, %s6, %s4
  $region1: #{tpu_custom_call.1} parent=0
    #allocation2 [shape = 'u8[4096]{0}', space=vmem, size = 0x1000, scoped, tag = 'input window, operand 1, single buffered']
    #allocation3 [shape = 's32[1]{0}', space=sflag, size = 0x4, scoped, tag = 'scoped memory for tpu_custom_call.1']
    %8 = vsyncpa [#allocation3], 0
    // Predicated region
    $region2: #{tpu_custom_call.1} parent=1 // pred_check
      _
    $region3: #{tpu_custom_call.1} parent=1 // pred_check_branch
      %10 = sbr.rel (0) target = $region5
    $region4: #{tpu_custom_call.1} parent=1 // pred_region
      _
    $region5: #{tpu_custom_call.1} parent=1 // pred_fallthru
      _
    // Predicated region
    $region6: #{tpu_custom_call.1} parent=1 // pred_check
      _
    $region7: #{tpu_custom_call.1} parent=1 // pred_check_branch
      %12 = sbr.rel (0) target = $region9
    $region8: #{tpu_custom_call.1} parent=1 // pred_region
      %s14 = ssub.s32 128, 128
      %15 = vsyncadd [#allocation3], %s14
      %s17 = sshll.u32 [#allocation2], 4
      %s18 = int_to_ptr.vmem [resolvable:$true] %s17
      %20 = dma.hbm_to_vmem [thread:$0]  %s1, 128, %s18, [#allocation3]
    $region9: #{tpu_custom_call.1} parent=1 // pred_fallthru
      _
    // Predicated region
    $region10: #{tpu_custom_call.1} parent=1 // pred_check
      _
    $region11: #{tpu_custom_call.1} parent=1 // pred_check_branch
      %22 = sbr.rel (0) target = $region13
    $region12: #{tpu_custom_call.1} parent=1 // pred_region
      _
    $region13: #{tpu_custom_call.1} parent=1 // pred_fallthru
      _
    // Predicated region
    $region14: #{tpu_custom_call.1} parent=1 // pred_check
      _
    $region15: #{tpu_custom_call.1} parent=1 // pred_check_branch
      %24 = sbr.rel (0) target = $region17
    $region16: #{tpu_custom_call.1} parent=1 // pred_region
      %25 = dma.done [#allocation3], 128
    $region17: #{tpu_custom_call.1} parent=1 // pred_fallthru
      _
    %v26 = vld [vmem:[%s0] sm:$0xff]
    %v27 = vld [vmem:[#allocation2] sm:$0xff]
    %v28 = vld [vmem:[%s2] sm:$0xff]
    %v29 = vsub.f32 %v26, %v27
    %v30 = vadd.f32 %v29, 1e-06
    %v31 = vmul.f32 %v30, %v30
    %vm32 = vcmask 261120
    %v33 = vsel %vm32, %v31, 0.0
    %34 = vadd.xlane.f32.xlu0 %v33
    %v35 = vpop.xlane.xlu0 %34
    %v36 = vrsqrt.pop %v35
    %v37 = vmul.f32 %v35, %v36
    %vm38 = vcmp.eq.f32.partialorder %v35, inf
    %v39 = vsel %vm38, %v35, %v37
    %vm40 = vcmp.eq.f32.partialorder %v35, 0.0
    %v41 = vand.u32 %v35, 2147483648
    %v42 = vsel %vm40, %v41, %v39
    %v43 = vsub.f32 2.0, %v42
    %v44 = vmax.f32 %v43, 0.0
    %v45 = vsub.f32 1.0, %v28
    %v46 = vmul.f32 %v45, %v35
    %v47 = vmul.f32 %v44, %v44
    %v48 = vmul.f32 %v28, %v47
    %v49 = vadd.f32 %v46, %v48
    %vm50 = vcmask 7168
    %51 = vst.msk [vmem:[%s3] sm:$0xff] %vm50, %v49
    // Predicated region
    $region18: #{tpu_custom_call.1} parent=1 // pred_check
      _
    $region19: #{tpu_custom_call.1} parent=1 // pred_check_branch
      %53 = sbr.rel (0) target = $region21
    $region20: #{tpu_custom_call.1} parent=1 // pred_region
      _
    $region21: #{tpu_custom_call.1} parent=1 // pred_fallthru
      _
    // Predicated region
    $region22: #{tpu_custom_call.1} parent=1 // pred_check
      _
    $region23: #{tpu_custom_call.1} parent=1 // pred_check_branch
      %55 = sbr.rel (0) target = $region25
    $region24: #{tpu_custom_call.1} parent=1 // pred_region
      _
    $region25: #{tpu_custom_call.1} parent=1 // pred_fallthru
      _
    %56 = vsyncpa [#allocation3], 1

</llo_original>
